<compile_context>
chip_gen: v7x
topology: tpu7x:2x2x1
jax: 0.10.0
libtpu: 0.0.40
codegen_flags: <defaults>
</compile_context>

<pallas_src>
import functools

import jax
import jax.numpy as jnp
from jax.experimental import pallas as pl
from jax.experimental.pallas import tpu as pltpu

LANE = 128
SUBLANE = 8


def _round_up(n, m):
    return ((n + m - 1) // m) * m


def dqn_mlp_kernel(x_ref, w1_ref, w2_ref, w3_ref, b_ref, o_ref):
    """Fused 3-layer MLP on one (TB, I) batch tile.

    Weights / biases have constant index_maps -> VMEM-resident across the
    whole batch grid (Mosaic skips the re-DMA for constant block indices);
    only the x tile and the narrow out tile stream per grid step.
    """
    Hp = w1_ref.shape[1]          # padded hidden width (multiple of 128)
    O = o_ref.shape[1]            # real output width (e.g. 4)
    b = b_ref[...]                # (3, BW) consolidated f32 biases

    # fc1 + ReLU  (x cast to the weight dtype in-register; f32 accumulation)
    h1 = jnp.dot(x_ref[...].astype(w1_ref.dtype), w1_ref[...],
                 preferred_element_type=jnp.float32)
    h1 = jnp.maximum(h1 + b[0:1, :Hp], 0.0)

    # fc2 + ReLU
    h2 = jnp.dot(h1.astype(w2_ref.dtype), w2_ref[...],
                 preferred_element_type=jnp.float32)
    h2 = jnp.maximum(h2 + b[1:2, :Hp], 0.0)

    # fc3: lane-dense MXU matmul, then store only the real output columns.
    out = jnp.dot(h2.astype(w3_ref.dtype), w3_ref[...],
                  preferred_element_type=jnp.float32)
    o_ref[...] = (out[:, :O] + b[2:3, :O]).astype(o_ref.dtype)


def init_params(key, input_size, hidden_size, output_size):
    """Deterministic init mimicking nn.Linear's uniform(-1/sqrt(fan_in), ...)."""
    ks = jax.random.split(key, 6)

    def linear(kw, kb, fan_in, fan_out):
        bound = 1.0 / jnp.sqrt(fan_in)
        # stored as (fan_in, fan_out) == W.T in PyTorch terms
        w = jax.random.uniform(kw, (fan_in, fan_out), jnp.float32, -bound, bound)
        b = jax.random.uniform(kb, (1, fan_out), jnp.float32, -bound, bound)
        return w, b

    w1, b1 = linear(ks[0], ks[1], input_size, hidden_size)
    w2, b2 = linear(ks[2], ks[3], hidden_size, hidden_size)
    w3, b3 = linear(ks[4], ks[5], hidden_size, output_size)
    return {"w1": w1, "b1": b1, "w2": w2, "b2": b2, "w3": w3, "b3": b3}


def prepare_params(params, dtype=jnp.bfloat16):
    """Pad weights once on the host.

    * w1 keeps its real input width (I, Hp)  -> x streams unpadded.
    * w2 padded to (Hp, Hp), w3 padded to (Hp, Op) so the hidden matmuls stay
      lane-dense.  Zero padding is numerically exact (ReLU(0)=0, zero
      rows/cols contribute 0, zero bias lanes).
    * dtype defaults to bf16 (MXU-native input on all generations); pass
      jnp.float32 for bit-tight checks.  Biases stay f32.
    """
    w1, b1 = params["w1"], params["b1"]
    w2, b2 = params["w2"], params["b2"]
    w3, b3 = params["w3"], params["b3"]

    I, H = w1.shape
    O = w3.shape[1]
    Hp, Op = _round_up(H, LANE), _round_up(O, LANE)
    BW = max(Hp, Op)

    def pad2(a, rows, cols):
        out = jnp.zeros((rows, cols), dtype)
        return out.at[: a.shape[0], : a.shape[1]].set(a.astype(dtype))

    w1p = pad2(w1, I, Hp)      # input dim left unpadded on purpose
    w2p = pad2(w2, Hp, Hp)
    w3p = pad2(w3, Hp, Op)

    b = jnp.zeros((3, BW), jnp.float32)
    b = b.at[0, :H].set(b1.reshape(-1).astype(jnp.float32))
    b = b.at[1, :H].set(b2.reshape(-1).astype(jnp.float32))
    b = b.at[2, :O].set(b3.reshape(-1).astype(jnp.float32))
    return w1p, w2p, w3p, b


@functools.partial(jax.jit, static_argnames=("output_size", "block_batch"))
def dqn_forward(x, w1, w2, w3, b, *, output_size, block_batch=1024):
    """x: (B, input_size); w*, b: params from prepare_params."""
    B, I = x.shape
    assert w1.shape[0] == I

    # Pad the batch only to a sublane multiple (usually a no-op).  The last
    # grid block may be partial: OOB reads produce garbage rows, but those
    # rows only affect their own (masked-out) output rows since the matmul
    # contracts over features, never over batch.
    Bp = _round_up(B, SUBLANE)
    if Bp != B:
        x = jnp.pad(x, ((0, Bp - B), (0, 0)))

    # Batch tile: multiple of 8 sublanes, large enough to amortize per-step
    # overhead, but keep >= 2 grid steps when possible so v7x's two
    # TensorCores can split the batch (harmless on v5e/v6e).
    TB = max(SUBLANE, min(block_batch, _round_up(pl.cdiv(Bp, 2), SUBLANE), Bp))
    grid = (pl.cdiv(Bp, TB),)

    out_p = pl.pallas_call(
        dqn_mlp_kernel,
        out_shape=jax.ShapeDtypeStruct((Bp, output_size), jnp.float32),
        grid=grid,
        in_specs=[
            pl.BlockSpec((TB, I), lambda i: (i, 0)),     # x streams at real width
            pl.BlockSpec(w1.shape, lambda i: (0, 0)),    # weights: VMEM-resident
            pl.BlockSpec(w2.shape, lambda i: (0, 0)),
            pl.BlockSpec(w3.shape, lambda i: (0, 0)),
            pl.BlockSpec(b.shape, lambda i: (0, 0)),     # consolidated biases
        ],
        out_specs=pl.BlockSpec((TB, output_size), lambda i: (i, 0)),
        compiler_params=pltpu.CompilerParams(
            dimension_semantics=("parallel",),           # v7x: 2 TCs split batch
        ),
    )(x, w1, w2, w3, b)

    return out_p if Bp == B else out_p[:B]


def dqn_reference(x, p):
    h1 = jnp.maximum(x @ p["w1"] + p["b1"], 0.0)
    h2 = jnp.maximum(h1 @ p["w2"] + p["b2"], 0.0)
    return h2 @ p["w3"] + p["b3"]


if __name__ == "__main__":
    key = jax.random.PRNGKey(0)
    k_param, k_x, k_x2 = jax.random.split(key, 3)

    batch = 8
    input_size = 16    # e.g. Freeway state vector
    hidden_size = 32
    output_size = 4    # action-value head

    params = init_params(k_param, input_size, hidden_size, output_size)

    # --- f32 path: tight correctness check (grid = 1 step) -----------------
    w1f, w2f, w3f, bf = prepare_params(params, dtype=jnp.float32)
    x = jax.random.normal(k_x, (batch, input_size), jnp.float32)
    out = dqn_forward(x, w1f, w2f, w3f, bf, output_size=output_size)
    out = jax.block_until_ready(out)
    ref = dqn_reference(x, params)
    assert out.shape == (batch, output_size)
    assert jnp.allclose(out, ref, atol=1e-5, rtol=1e-5)

    # --- bf16 default path: large batch, multi-step grid + pipelining ------
    w1p, w2p, w3p, bp = prepare_params(params)   # bf16 weights by default
    big_batch = 2048
    xb = jax.random.normal(k_x2, (big_batch, input_size), jnp.float32)
    outb = dqn_forward(xb, w1p, w2p, w3p, bp, output_size=output_size,
                       block_batch=1024)
    outb = jax.block_until_ready(outb)
    refb = dqn_reference(xb, params)
    assert outb.shape == (big_batch, output_size)
    # bf16 MXU inputs (f32 accumulation): loose tolerance vs the f32 reference.
    assert jnp.allclose(outb, refb, atol=5e-2, rtol=5e-2)

    print("KERNEL_OK")
</pallas_src>

<mosaic_0001>
module attributes {stable_mosaic.version = 11 : i64} {
  func.func @dqn_mlp_kernel(%arg0: i32, %arg1: memref<8x16xf32, #tpu.memory_space<vmem>>, %arg2: memref<16x128xf32, #tpu.memory_space<vmem>>, %arg3: memref<128x128xf32, #tpu.memory_space<vmem>>, %arg4: memref<128x128xf32, #tpu.memory_space<vmem>>, %arg5: memref<3x128xf32, #tpu.memory_space<vmem>>, %arg6: memref<8x4xf32, #tpu.memory_space<vmem>>) attributes {dimension_semantics = [#tpu.dimension_semantics<parallel>], iteration_bounds = array<i64: 1>, scalar_prefetch = 0 : i64, scratch_operands = 0 : i64, tpu.core_type = #tpu.core_type<tc>, window_params = [{transform_indices = @transform_0, window_bounds = array<i64: 8, 16>}, {pipeline_mode = #tpu.pipeline_mode<synchronous>, transform_indices = @transform_1, window_bounds = array<i64: 16, 128>}, {pipeline_mode = #tpu.pipeline_mode<synchronous>, transform_indices = @transform_2, window_bounds = array<i64: 128, 128>}, {pipeline_mode = #tpu.pipeline_mode<synchronous>, transform_indices = @transform_3, window_bounds = array<i64: 128, 128>}, {pipeline_mode = #tpu.pipeline_mode<synchronous>, transform_indices = @transform_4, window_bounds = array<i64: 3, 128>}, {transform_indices = @transform_5, window_bounds = array<i64: 8, 4>}]} {
    %c0 = arith.constant 0 : index
    %c0_0 = arith.constant 0 : index
    %0 = vector.load %arg5[%c0, %c0_0] : memref<3x128xf32, #tpu.memory_space<vmem>>, vector<3x128xf32>
    %c0_1 = arith.constant 0 : index
    %c0_2 = arith.constant 0 : index
    %1 = vector.load %arg1[%c0_1, %c0_2] : memref<8x16xf32, #tpu.memory_space<vmem>>, vector<8x16xf32>
    %c0_3 = arith.constant 0 : index
    %c0_4 = arith.constant 0 : index
    %2 = vector.load %arg2[%c0_3, %c0_4] : memref<16x128xf32, #tpu.memory_space<vmem>>, vector<16x128xf32>
    %cst = arith.constant dense<0.000000e+00> : vector<8x128xf32>
    %3 = tpu.matmul %1, %2, %cst {dimension_numbers = #tpu.dot_dimension_numbers<[1], [0], [0], [1], [0, 0, 1, 1], [], []>} : vector<8x16xf32>, vector<16x128xf32>, vector<8x128xf32> -> vector<8x128xf32>
    %4 = vector.extract_strided_slice %0 {offsets = [0, 0], sizes = [1, 128], strides = [1, 1]} : vector<3x128xf32> to vector<1x128xf32>
    %5 = vector.broadcast %4 : vector<1x128xf32> to vector<8x128xf32>
    %6 = arith.addf %3, %5 : vector<8x128xf32>
    %cst_5 = arith.constant 0.000000e+00 : f32
    %7 = vector.broadcast %cst_5 : f32 to vector<8x128xf32>
    %8 = arith.maximumf %6, %7 : vector<8x128xf32>
    %c0_6 = arith.constant 0 : index
    %c0_7 = arith.constant 0 : index
    %9 = vector.load %arg3[%c0_6, %c0_7] : memref<128x128xf32, #tpu.memory_space<vmem>>, vector<128x128xf32>
    %cst_8 = arith.constant dense<0.000000e+00> : vector<8x128xf32>
    %10 = tpu.matmul %8, %9, %cst_8 {dimension_numbers = #tpu.dot_dimension_numbers<[1], [0], [0], [1], [0, 0, 1, 1], [], []>} : vector<8x128xf32>, vector<128x128xf32>, vector<8x128xf32> -> vector<8x128xf32>
    %11 = vector.extract_strided_slice %0 {offsets = [1, 0], sizes = [1, 128], strides = [1, 1]} : vector<3x128xf32> to vector<1x128xf32>
    %12 = vector.broadcast %11 : vector<1x128xf32> to vector<8x128xf32>
    %13 = arith.addf %10, %12 : vector<8x128xf32>
    %cst_9 = arith.constant 0.000000e+00 : f32
    %14 = vector.broadcast %cst_9 : f32 to vector<8x128xf32>
    %15 = arith.maximumf %13, %14 : vector<8x128xf32>
    %c0_10 = arith.constant 0 : index
    %c0_11 = arith.constant 0 : index
    %16 = vector.load %arg4[%c0_10, %c0_11] : memref<128x128xf32, #tpu.memory_space<vmem>>, vector<128x128xf32>
    %cst_12 = arith.constant dense<0.000000e+00> : vector<8x128xf32>
    %17 = tpu.matmul %15, %16, %cst_12 {dimension_numbers = #tpu.dot_dimension_numbers<[1], [0], [0], [1], [0, 0, 1, 1], [], []>} : vector<8x128xf32>, vector<128x128xf32>, vector<8x128xf32> -> vector<8x128xf32>
    %18 = vector.extract_strided_slice %17 {offsets = [0, 0], sizes = [8, 4], strides = [1, 1]} : vector<8x128xf32> to vector<8x4xf32>
    %19 = vector.extract_strided_slice %0 {offsets = [2, 0], sizes = [1, 4], strides = [1, 1]} : vector<3x128xf32> to vector<1x4xf32>
    %20 = vector.broadcast %19 : vector<1x4xf32> to vector<8x4xf32>
    %21 = arith.addf %18, %20 : vector<8x4xf32>
    %c0_13 = arith.constant 0 : index
    %c0_14 = arith.constant 0 : index
    %22 = vector.load %arg6[%c0_13, %c0_14] : memref<8x4xf32, #tpu.memory_space<vmem>>, vector<8x4xf32>
    tpu.vector_store %arg6[%c0_13, %c0_14], %21 {strides = array<i32>} : memref<8x4xf32, #tpu.memory_space<vmem>>, vector<8x4xf32>,
    return
  }
  func.func @transform_0(%arg0: i32) -> (i32, i32) {
    %c0_i32 = arith.constant 0 : i32
    %c0_i32_0 = arith.constant 0 : i32
    return %arg0, %c0_i32 : i32, i32
  }
  func.func @transform_1(%arg0: i32) -> (i32, i32) {
    %c0_i32 = arith.constant 0 : i32
    %c0_i32_0 = arith.constant 0 : i32
    %c0_i32_1 = arith.constant 0 : i32
    return %c0_i32, %c0_i32_0 : i32, i32
  }
  func.func @transform_2(%arg0: i32) -> (i32, i32) {
    %c0_i32 = arith.constant 0 : i32
    %c0_i32_0 = arith.constant 0 : i32
    %c0_i32_1 = arith.constant 0 : i32
    return %c0_i32, %c0_i32_0 : i32, i32
  }
  func.func @transform_3(%arg0: i32) -> (i32, i32) {
    %c0_i32 = arith.constant 0 : i32
    %c0_i32_0 = arith.constant 0 : i32
    %c0_i32_1 = arith.constant 0 : i32
    return %c0_i32, %c0_i32_0 : i32, i32
  }
  func.func @transform_4(%arg0: i32) -> (i32, i32) {
    %c0_i32 = arith.constant 0 : i32
    %c0_i32_0 = arith.constant 0 : i32
    %c0_i32_1 = arith.constant 0 : i32
    return %c0_i32, %c0_i32_0 : i32, i32
  }
  func.func @transform_5(%arg0: i32) -> (i32, i32) {
    %c0_i32 = arith.constant 0 : i32
    %c0_i32_0 = arith.constant 0 : i32
    return %arg0, %c0_i32 : i32, i32
  }
}

</mosaic_0001>

<llo_original>
// kernel: dqn_forward.1
$region0: #{dqn_forward.1}
  #allocation0 [shape = 'u32[]', space=smem, size = 0x4, offset = 0x4, fixed_abs, tag = 'smem constant byte address 0x4 - core index']
  #allocation1 [shape = 'u32[144,128]{1,0:T(1,128)}', space=vmem, size = 0x12000, scoped, tag = 'internal scratch']
  %s0 = inlined_call_operand.hbm [shape: f32[8,16], index: 0, kind: input, shape index: {}]
  %s1 = inlined_call_operand.hbm [shape: f32[16,128], index: 1, kind: input, shape index: {}]
  %s2 = inlined_call_operand.hbm [shape: f32[128,128], index: 2, kind: input, shape index: {}]
  %s3 = inlined_call_operand.hbm [shape: f32[128,128], index: 3, kind: input, shape index: {}]
  %s4 = inlined_call_operand.vmem [shape: f32[3,128], index: 4, kind: input, shape index: {}]
  %s5 = inlined_call_operand.vmem [shape: f32[8,4], index: 5, kind: output, shape index: {}]
  %s6 = sld [smem:[#allocation0]]
  $region46: #{dqn_forward.1} parent=0
    _
  %s8 = ssub.s32 1, %s6
  %s9 = scalar_select 0, %s8, %s6
  $region1: #{dqn_forward.1} parent=0
    #allocation2 [shape = 'u8[4096]{0}', space=vmem, size = 0x1000, scoped, tag = 'input window, operand 0, single buffered']
    #allocation3 [shape = 's32[1]{0}', space=sflag, size = 0x4, scoped, tag = 'scoped memory for dqn_forward.1']
    #allocation4 [shape = 'u8[8192]{0}', space=vmem, size = 0x2000, scoped, tag = 'input window, operand 1, single buffered']
    #allocation5 [shape = 's32[1]{0}', space=sflag, size = 0x4, scoped, tag = 'scoped memory for dqn_forward.1']
    #allocation6 [shape = 'u8[65536]{0}', space=vmem, size = 0x10000, scoped, tag = 'input window, operand 2, single buffered']
    #allocation7 [shape = 'u8[65536]{0}', space=vmem, size = 0x10000, scoped, tag = 'input window, operand 3, single buffered']
    #allocation8 [shape = 's32[1]{0}', space=sflag, size = 0x4, scoped, tag = 'scoped memory for dqn_forward.1']
    %10 = vsyncpa [#allocation3], 0
    %11 = vsyncpa [#allocation5], 0
    %12 = vsyncpa [#allocation8], 0
    // Predicated region
    $region2: #{dqn_forward.1} parent=1 // pred_check
      _
    $region3: #{dqn_forward.1} parent=1 // pred_check_branch
      %14 = sbr.rel (0) target = $region5
    $region4: #{dqn_forward.1} parent=1 // pred_region
      %s16 = ssub.s32 128, 128
      %17 = vsyncadd [#allocation3], %s16
      %s19 = sshll.u32 [#allocation2], 4
      %s20 = int_to_ptr.vmem [resolvable:$true] %s19
      %22 = dma.hbm_to_vmem [thread:$0]  %s0, 128, %s20, [#allocation3]
    $region5: #{dqn_forward.1} parent=1 // pred_fallthru
      _
    // Predicated region
    $region6: #{dqn_forward.1} parent=1 // pred_check
      _
    $region7: #{dqn_forward.1} parent=1 // pred_check_branch
      %24 = sbr.rel (0) target = $region9
    $region8: #{dqn_forward.1} parent=1 // pred_region
      %s26 = ssub.s32 256, 256
      %27 = vsyncadd [#allocation5], %s26
      %s28 = sshll.u32 [#allocation4], 4
      %s29 = int_to_ptr.vmem [resolvable:$true] %s28
      %34 = dma.hbm_to_vmem [thread:$0]  %s1, 256, %s29, [#allocation5], 128, 128, 8
    $region9: #{dqn_forward.1} parent=1 // pred_fallthru
      _
    // Predicated region
    $region10: #{dqn_forward.1} parent=1 // pred_check
      _
    $region11: #{dqn_forward.1} parent=1 // pred_check_branch
      %36 = sbr.rel (0) target = $region13
    $region12: #{dqn_forward.1} parent=1 // pred_region
      %s38 = ssub.s32 2048, 2048
      %39 = vsyncadd [#allocation5], %s38
      %s40 = sshll.u32 [#allocation6], 4
      %s41 = int_to_ptr.vmem [resolvable:$true] %s40
      %46 = dma.hbm_to_vmem [thread:$0]  %s2, 2048, %s41, [#allocation5], 128, 128, 8
    $region13: #{dqn_forward.1} parent=1 // pred_fallthru
      _
    // Predicated region
    $region14: #{dqn_forward.1} parent=1 // pred_check
      _
    $region15: #{dqn_forward.1} parent=1 // pred_check_branch
      %48 = sbr.rel (0) target = $region17
    $region16: #{dqn_forward.1} parent=1 // pred_region
      %s50 = ssub.s32 2048, 2048
      %51 = vsyncadd [#allocation8], %s50
      %s52 = sshll.u32 [#allocation7], 4
      %s53 = int_to_ptr.vmem [resolvable:$true] %s52
      %58 = dma.hbm_to_vmem [thread:$0]  %s3, 2048, %s53, [#allocation8], 128, 128, 8
    $region17: #{dqn_forward.1} parent=1 // pred_fallthru
      _
    // Predicated region
    $region18: #{dqn_forward.1} parent=1 // pred_check
      _
    $region19: #{dqn_forward.1} parent=1 // pred_check_branch
      %60 = sbr.rel (0) target = $region21
    $region20: #{dqn_forward.1} parent=1 // pred_region
      _
    $region21: #{dqn_forward.1} parent=1 // pred_fallthru
      _
    // Predicated region
    $region22: #{dqn_forward.1} parent=1 // pred_check
      _
    $region23: #{dqn_forward.1} parent=1 // pred_check_branch
      %62 = sbr.rel (0) target = $region25
    $region24: #{dqn_forward.1} parent=1 // pred_region
      %63 = dma.done [#allocation3], 128
    $region25: #{dqn_forward.1} parent=1 // pred_fallthru
      _
    // Predicated region
    $region26: #{dqn_forward.1} parent=1 // pred_check
      _
    $region27: #{dqn_forward.1} parent=1 // pred_check_branch
      %65 = sbr.rel (0) target = $region29
    $region28: #{dqn_forward.1} parent=1 // pred_region
      %66 = dma.done [#allocation5], 256
    $region29: #{dqn_forward.1} parent=1 // pred_fallthru
      _
    // Predicated region
    $region30: #{dqn_forward.1} parent=1 // pred_check
      _
    $region31: #{dqn_forward.1} parent=1 // pred_check_branch
      %68 = sbr.rel (0) target = $region33
    $region32: #{dqn_forward.1} parent=1 // pred_region
      %69 = dma.done [#allocation5], 2048
    $region33: #{dqn_forward.1} parent=1 // pred_fallthru
      _
    // Predicated region
    $region34: #{dqn_forward.1} parent=1 // pred_check
      _
    $region35: #{dqn_forward.1} parent=1 // pred_check_branch
      %71 = sbr.rel (0) target = $region37
    $region36: #{dqn_forward.1} parent=1 // pred_region
      %72 = dma.done [#allocation8], 2048
    $region37: #{dqn_forward.1} parent=1 // pred_fallthru
      _
    %v73 = vld [vmem:[%s4] sm:$0x7]
    %v74 = vld [vmem:[#allocation2] sm:$0xff]
    %v75 = vld [vmem:[#allocation4] sm:$0xff]
    %v76 = vld [vmem:[#allocation4 + $0x8] sm:$0xff]
    %v77 = vlaneseq
    %v78 = vshrl.u32 %v77, 7
    %v79 = vsub.s32 0, %v78
    %v80 = vrot.slane %v73, %v79
    %vm81 = vcmask 130048
    %v83 = vsel %vm81, %v74, 0
    %85 = vmatprep.subr.mxu0 0.0
    %86 = vmatpush1.msra.mxu0 %v75
    %87 = vmatprep.subr.mxu0 0.0
    %88 = vmatpush1.msra.mxu0 %v76
    %89 = vmatprep.subr.mxu0 0.0
    %90 = vmatpush1.msra.mxu0 0.0
    %91 = vmatprep.subr.mxu0 0.0
    %92 = vmatpush1.msra.mxu0 0.0
    %93 = vmatprep.subr.mxu0 0.0
    %94 = vmatpush1.msra.mxu0 0.0
    %95 = vmatprep.subr.mxu0 0.0
    %96 = vmatpush1.msra.mxu0 0.0
    %97 = vmatprep.subr.mxu0 0.0
    %98 = vmatpush1.msra.mxu0 0.0
    %99 = vmatprep.subr.mxu0 0.0
    %100 = vmatpush1.msra.mxu0 0.0
    %101 = vmatprep.subr.mxu0 0.0
    %102 = vmatpush1.msra.mxu0 0.0
    %103 = vmatprep.subr.mxu0 0.0
    %104 = vmatpush1.msra.mxu0 0.0
    %105 = vmatprep.subr.mxu0 0.0
    %106 = vmatpush1.msra.mxu0 0.0
    %107 = vmatprep.subr.mxu0 0.0
    %108 = vmatpush1.msra.mxu0 0.0
    %109 = vmatprep.subr.mxu0 0.0
    %110 = vmatpush1.msra.mxu0 0.0
    %111 = vmatprep.subr.mxu0 0.0
    %112 = vmatpush1.msra.mxu0 0.0
    %113 = vmatprep.subr.mxu0 0.0
    %114 = vmatpush1.msra.mxu0 0.0
    %115 = vmatprep.subr.mxu0 0.0
    %116 = vmatpush1.msra.mxu0 0.0
    %117 = vmatprep.subr.mxu0 0.0
    %118 = vmatpush1.msra.mxu0 0.0
    %119 = vmatprep.subr.mxu0 0.0
    %120 = vmatpush1.msra.mxu0 0.0
    %121 = vmatprep.subr.mxu0 0.0
    %122 = vmatpush1.msra.mxu0 0.0
    %123 = vmatprep.subr.mxu0 0.0
    %124 = vmatpush1.msra.mxu0 0.0
    %125 = vmatprep.subr.mxu0 0.0
    %126 = vmatpush1.msra.mxu0 0.0
    %127 = vmatprep.subr.mxu0 0.0
    %128 = vmatpush1.msra.mxu0 0.0
    %129 = vmatprep.subr.mxu0 0.0
    %130 = vmatpush1.msra.mxu0 0.0
    %131 = vmatprep.subr.mxu0 0.0
    %132 = vmatpush1.msra.mxu0 0.0
    %133 = vmatprep.subr.mxu0 0.0
    %134 = vmatpush1.msra.mxu0 0.0
    %135 = vmatprep.subr.mxu0 0.0
    %136 = vmatpush1.msra.mxu0 0.0
    %137 = vmatprep.subr.mxu0 0.0
    %138 = vmatpush1.msra.mxu0 0.0
    %139 = vmatprep.subr.mxu0 0.0
    %140 = vmatpush1.msra.mxu0 0.0
    %141 = vmatprep.subr.mxu0 0.0
    %142 = vmatpush1.msra.mxu0 0.0
    %143 = vmatprep.subr.mxu0 0.0
    %144 = vmatpush1.msra.mxu0 0.0
    %145 = vmatprep.subr.mxu0 0.0
    %146 = vmatpush1.msra.mxu0 0.0
    %147 = vmatprep.subr.mxu0 0.0
    %148 = vmatpush1.msra.mxu0 0.0
    %149 = vmatprep.mubr.f32.mxu0 0.0
    %150 = vmatmul.mubr.f32.gmra.mrb[0].mxu0 %v83
    %v151 = vpop.f32.mrb[0].mxu0
    %v152 = vadd.f32 %v80, %v151
    %v153 = vpop.f32.mrb[0].mxu0
    %154 = vdwg.mxu0
    %v155 = vmax.f32 %v152, 0.0
    %v156 = vld [vmem:[#allocation6] sm:$0xff]
    %v157 = vld [vmem:[#allocation6 + $0x8] sm:$0xff]
    %v158 = vld [vmem:[#allocation6 + $0x10] sm:$0xff]
    %v159 = vld [vmem:[#allocation6 + $0x18] sm:$0xff]
    %v160 = vld [vmem:[#allocation6 + $0x20] sm:$0xff]
    %v161 = vld [vmem:[#allocation6 + $0x28] sm:$0xff]
    %v162 = vld [vmem:[#allocation6 + $0x30] sm:$0xff]
    %v163 = vld [vmem:[#allocation6 + $0x38] sm:$0xff]
    %v164 = vld [vmem:[#allocation6 + $0x40] sm:$0xff]
    %v165 = vld [vmem:[#allocation6 + $0x48] sm:$0xff]
    %v166 = vld [vmem:[#allocation6 + $0x50] sm:$0xff]
    %v167 = vld [vmem:[#allocation6 + $0x58] sm:$0xff]
    %v168 = vld [vmem:[#allocation6 + $0x60] sm:$0xff]
    %v169 = vld [vmem:[#allocation6 + $0x68] sm:$0xff]
    %v170 = vld [vmem:[#allocation6 + $0x70] sm:$0xff]
    %v171 = vld [vmem:[#allocation6 + $0x78] sm:$0xff]
    %v172 = vlaneseq
    %v173 = vshrl.u32 %v172, 7
    %v174 = vsub.s32 1, %v173
    %v175 = vrot.slane %v73, %v174
    %176 = vmatprep.subr.mxu0 0.0
    %177 = vmatpush1.msra.mxu0 %v156
    %178 = vmatprep.subr.mxu0 0.0
    %179 = vmatpush1.msra.mxu0 %v157
    %180 = vmatprep.subr.mxu0 0.0
    %181 = vmatpush1.msra.mxu0 %v158
    %182 = vmatprep.subr.mxu0 0.0
    %183 = vmatpush1.msra.mxu0 %v159
    %184 = vmatprep.subr.mxu0 0.0
    %185 = vmatpush1.msra.mxu0 %v160
    %186 = vmatprep.subr.mxu0 0.0
    %187 = vmatpush1.msra.mxu0 %v161
    %188 = vmatprep.subr.mxu0 0.0
    %189 = vmatpush1.msra.mxu0 %v162
    %190 = vmatprep.subr.mxu0 0.0
    %191 = vmatpush1.msra.mxu0 %v163
    %192 = vmatprep.subr.mxu0 0.0
    %193 = vmatpush1.msra.mxu0 %v164
    %194 = vmatprep.subr.mxu0 0.0
    %195 = vmatpush1.msra.mxu0 %v165
    %196 = vmatprep.subr.mxu0 0.0
    %197 = vmatpush1.msra.mxu0 %v166
    %198 = vmatprep.subr.mxu0 0.0
    %199 = vmatpush1.msra.mxu0 %v167
    %200 = vmatprep.subr.mxu0 0.0
    %201 = vmatpush1.msra.mxu0 %v168
    %202 = vmatprep.subr.mxu0 0.0
    %203 = vmatpush1.msra.mxu0 %v169
    %204 = vmatprep.subr.mxu0 0.0
    %205 = vmatpush1.msra.mxu0 %v170
    %206 = vmatprep.subr.mxu0 0.0
    %207 = vmatpush1.msra.mxu0 %v171
    %208 = vmatprep.subr.mxu0 0.0
    %209 = vmatpush1.msra.mxu0 0.0
    %210 = vmatprep.subr.mxu0 0.0
    %211 = vmatpush1.msra.mxu0 0.0
    %212 = vmatprep.subr.mxu0 0.0
    %213 = vmatpush1.msra.mxu0 0.0
    %214 = vmatprep.subr.mxu0 0.0
    %215 = vmatpush1.msra.mxu0 0.0
    %216 = vmatprep.subr.mxu0 0.0
    %217 = vmatpush1.msra.mxu0 0.0
    %218 = vmatprep.subr.mxu0 0.0
    %219 = vmatpush1.msra.mxu0 0.0
    %220 = vmatprep.subr.mxu0 0.0
    %221 = vmatpush1.msra.mxu0 0.0
    %222 = vmatprep.subr.mxu0 0.0
    %223 = vmatpush1.msra.mxu0 0.0
    %224 = vmatprep.subr.mxu0 0.0
    %225 = vmatpush1.msra.mxu0 0.0
    %226 = vmatprep.subr.mxu0 0.0
    %227 = vmatpush1.msra.mxu0 0.0
    %228 = vmatprep.subr.mxu0 0.0
    %229 = vmatpush1.msra.mxu0 0.0
    %230 = vmatprep.subr.mxu0 0.0
    %231 = vmatpush1.msra.mxu0 0.0
    %232 = vmatprep.subr.mxu0 0.0
    %233 = vmatpush1.msra.mxu0 0.0
    %234 = vmatprep.subr.mxu0 0.0
    %235 = vmatpush1.msra.mxu0 0.0
    %236 = vmatprep.subr.mxu0 0.0
    %237 = vmatpush1.msra.mxu0 0.0
    %238 = vmatprep.subr.mxu0 0.0
    %239 = vmatpush1.msra.mxu0 0.0
    %240 = vmatprep.mubr.f32.mxu0 0.0
    %241 = vmatmul.mubr.f32.gmra.mrb[0].mxu0 %v155
    %v242 = vpop.f32.mrb[0].mxu0
    %v243 = vadd.f32 %v175, %v242
    %v244 = vpop.f32.mrb[0].mxu0
    %245 = vdwg.mxu0
    %v246 = vmax.f32 %v243, 0.0
    %v247 = vld [vmem:[#allocation7] sm:$0xff]
    %v248 = vld [vmem:[#allocation7 + $0x8] sm:$0xff]
    %v249 = vld [vmem:[#allocation7 + $0x10] sm:$0xff]
    %v250 = vld [vmem:[#allocation7 + $0x18] sm:$0xff]
    %v251 = vld [vmem:[#allocation7 + $0x20] sm:$0xff]
    %v252 = vld [vmem:[#allocation7 + $0x28] sm:$0xff]
    %v253 = vld [vmem:[#allocation7 + $0x30] sm:$0xff]
    %v254 = vld [vmem:[#allocation7 + $0x38] sm:$0xff]
    %v255 = vld [vmem:[#allocation7 + $0x40] sm:$0xff]
    %v256 = vld [vmem:[#allocation7 + $0x48] sm:$0xff]
    %v257 = vld [vmem:[#allocation7 + $0x50] sm:$0xff]
    %v258 = vld [vmem:[#allocation7 + $0x58] sm:$0xff]
    %v259 = vld [vmem:[#allocation7 + $0x60] sm:$0xff]
    %v260 = vld [vmem:[#allocation7 + $0x68] sm:$0xff]
    %v261 = vld [vmem:[#allocation7 + $0x70] sm:$0xff]
    %v262 = vld [vmem:[#allocation7 + $0x78] sm:$0xff]
    %263 = vmatprep.subr.mxu0 0.0
    %264 = vmatpush1.msra.mxu0 %v247
    %265 = vmatprep.subr.mxu0 0.0
    %266 = vmatpush1.msra.mxu0 %v248
    %267 = vmatprep.subr.mxu0 0.0
    %268 = vmatpush1.msra.mxu0 %v249
    %269 = vmatprep.subr.mxu0 0.0
    %270 = vmatpush1.msra.mxu0 %v250
    %271 = vmatprep.subr.mxu0 0.0
    %272 = vmatpush1.msra.mxu0 %v251
    %273 = vmatprep.subr.mxu0 0.0
    %274 = vmatpush1.msra.mxu0 %v252
    %275 = vmatprep.subr.mxu0 0.0
    %276 = vmatpush1.msra.mxu0 %v253
    %277 = vmatprep.subr.mxu0 0.0
    %278 = vmatpush1.msra.mxu0 %v254
    %279 = vmatprep.subr.mxu0 0.0
    %280 = vmatpush1.msra.mxu0 %v255
    %281 = vmatprep.subr.mxu0 0.0
    %282 = vmatpush1.msra.mxu0 %v256
    %283 = vmatprep.subr.mxu0 0.0
    %284 = vmatpush1.msra.mxu0 %v257
    %285 = vmatprep.subr.mxu0 0.0
    %286 = vmatpush1.msra.mxu0 %v258
    %287 = vmatprep.subr.mxu0 0.0
    %288 = vmatpush1.msra.mxu0 %v259
    %289 = vmatprep.subr.mxu0 0.0
    %290 = vmatpush1.msra.mxu0 %v260
    %291 = vmatprep.subr.mxu0 0.0
    %292 = vmatpush1.msra.mxu0 %v261
    %293 = vmatprep.subr.mxu0 0.0
    %294 = vmatpush1.msra.mxu0 %v262
    %295 = vmatprep.subr.mxu0 0.0
    %296 = vmatpush1.msra.mxu0 0.0
    %297 = vmatprep.subr.mxu0 0.0
    %298 = vmatpush1.msra.mxu0 0.0
    %299 = vmatprep.subr.mxu0 0.0
    %300 = vmatpush1.msra.mxu0 0.0
    %301 = vmatprep.subr.mxu0 0.0
    %302 = vmatpush1.msra.mxu0 0.0
    %303 = vmatprep.subr.mxu0 0.0
    %304 = vmatpush1.msra.mxu0 0.0
    %305 = vmatprep.subr.mxu0 0.0
    %306 = vmatpush1.msra.mxu0 0.0
    %307 = vmatprep.subr.mxu0 0.0
    %308 = vmatpush1.msra.mxu0 0.0
    %309 = vmatprep.subr.mxu0 0.0
    %310 = vmatpush1.msra.mxu0 0.0
    %311 = vmatprep.subr.mxu0 0.0
    %312 = vmatpush1.msra.mxu0 0.0
    %313 = vmatprep.subr.mxu0 0.0
    %314 = vmatpush1.msra.mxu0 0.0
    %315 = vmatprep.subr.mxu0 0.0
    %316 = vmatpush1.msra.mxu0 0.0
    %317 = vmatprep.subr.mxu0 0.0
    %318 = vmatpush1.msra.mxu0 0.0
    %319 = vmatprep.subr.mxu0 0.0
    %320 = vmatpush1.msra.mxu0 0.0
    %321 = vmatprep.subr.mxu0 0.0
    %322 = vmatpush1.msra.mxu0 0.0
    %323 = vmatprep.subr.mxu0 0.0
    %324 = vmatpush1.msra.mxu0 0.0
    %325 = vmatprep.subr.mxu0 0.0
    %326 = vmatpush1.msra.mxu0 0.0
    %327 = vmatprep.mubr.f32.mxu0 0.0
    %328 = vmatmul.mubr.f32.gmra.mrb[0].mxu0 %v246
    %v329 = vpop.f32.mrb[0].mxu0
    %v330 = vadd.f32 0.0, %v329
    %v331 = vpop.f32.mrb[0].mxu0
    %332 = vdwg.mxu0
    %v333 = vlaneseq
    %v334 = vshrl.u32 %v333, 7
    %v335 = vsub.s32 2, %v334
    %v336 = vrot.slane %v73, %v335
    %v337 = vadd.f32 %v330, %v336
    %vm338 = vcmask 31744
    %339 = vst.msk [vmem:[%s5] sm:$0xff] %vm338, %v337
    // Predicated region
    $region38: #{dqn_forward.1} parent=1 // pred_check
      _
    $region39: #{dqn_forward.1} parent=1 // pred_check_branch
      %341 = sbr.rel (0) target = $region41
    $region40: #{dqn_forward.1} parent=1 // pred_region
      _
    $region41: #{dqn_forward.1} parent=1 // pred_fallthru
      _
    // Predicated region
    $region42: #{dqn_forward.1} parent=1 // pred_check
      _
    $region43: #{dqn_forward.1} parent=1 // pred_check_branch
      %343 = sbr.rel (0) target = $region45
    $region44: #{dqn_forward.1} parent=1 // pred_region
      _
    $region45: #{dqn_forward.1} parent=1 // pred_fallthru
      _
    %344 = vsyncpa [#allocation3], 1
    %345 = vsyncpa [#allocation5], 1
    %346 = vsyncpa [#allocation8], 1

</llo_original>
